<compile_context>
chip_gen: v7x
topology: tpu7x:2x2x1
jax: 0.10.0
libtpu: 0.0.40
codegen_flags: <defaults>
</compile_context>

<pallas_src>
import numpy as np
import jax
import jax.numpy as jnp
from jax.experimental import pallas as pl
from jax.experimental.pallas import tpu as pltpu

var_size = {
    'dsads':  {'in_size': 45, 'ker_size': 9, 'fc_size': 32 * 25},
    'pamap':  {'in_size': 27, 'ker_size': 9, 'fc_size': 32 * 122},
    'uschad': {'in_size': 6,  'ker_size': 6, 'fc_size': 64 * 58},
}


def _round_up(a, b):
    return (a + b - 1) // b * b


def init_params(taskname, key):
    cfg = var_size[taskname]
    Cin0, C2, Cout, K = 32, 16, cfg['in_size'], cfg['ker_size']
    ks = jax.random.split(key, 12)
    p = {}
    # ConvTranspose2d weights: (in_channels, out_channels, kH=1, kW=K), biases.
    p['W2'] = 0.1 * jax.random.normal(ks[0], (Cin0, C2, 1, K), jnp.float32)
    p['b2'] = 0.1 * jax.random.normal(ks[1], (C2,), jnp.float32)
    # BatchNorm2d(16): gamma, beta, running_mean, running_var (eval mode).
    p['g2'] = 1.0 + 0.1 * jax.random.normal(ks[2], (C2,), jnp.float32)
    p['be2'] = 0.1 * jax.random.normal(ks[3], (C2,), jnp.float32)
    p['m2'] = 0.1 * jax.random.normal(ks[4], (C2,), jnp.float32)
    p['v2'] = 0.5 + 0.5 * jnp.abs(jax.random.normal(ks[5], (C2,), jnp.float32))
    p['W1'] = 0.1 * jax.random.normal(ks[6], (C2, Cout, 1, K), jnp.float32)
    p['b1'] = 0.1 * jax.random.normal(ks[7], (Cout,), jnp.float32)
    p['g1'] = 1.0 + 0.1 * jax.random.normal(ks[8], (Cout,), jnp.float32)
    p['be1'] = 0.1 * jax.random.normal(ks[9], (Cout,), jnp.float32)
    p['m1'] = 0.1 * jax.random.normal(ks[10], (Cout,), jnp.float32)
    p['v1'] = 0.5 + 0.5 * jnp.abs(jax.random.normal(ks[11], (Cout,), jnp.float32))
    return p


def act_network_decoder_forward(x, params, taskname, tm=512):
    cfg = var_size[taskname]
    Cin0, C2, Cout, K = 32, 16, cfg['in_size'], cfg['ker_size']
    H = cfg['fc_size'] // 32
    W2o = K                      # ConvT2 output width (input width = 1)
    W2p = (W2o - 2) // 2 + 1     # after MaxPool2d((1,2), stride=2)
    W1o = (W2p - 1) * 2 + K      # ConvT1 output width
    W1p = (W1o - 2) // 2 + 1     # after MaxPool2d((1,2), stride=2)
    N = x.shape[0]
    M = N * H
    eps = 1e-5

    # Lane geometry.
    L2 = 2 * W2p * C2                       # conv2 matmul out lanes ([even|odd] widths)
    Kc = W2p * C2                           # conv1 contraction depth (pooled lanes)
    Wpad = _round_up(W1p * Cout, 128)       # padded lanes per half of conv1 output
    Lout = 2 * Wpad                         # conv1 matmul out lanes ([even|odd], padded)

    # ---------- glue: BN-folded weight matrices, [even|odd] width ordering ----------
    # conv2: ConvTranspose2d(32->16,(1,K),s2) + BatchNorm2d(16) (eval).
    # Only widths 0..2*W2p-1 survive the pool; width K-1 (K odd) is dropped.
    inv2 = np.asarray(params['g2']) / np.sqrt(np.asarray(params['v2']) + eps)
    bias2 = (np.asarray(params['b2']) - np.asarray(params['m2'])) * inv2 + np.asarray(params['be2'])
    W2n = np.asarray(params['W2'])[:, :, 0, :]                       # (Cin0, C2, K)
    w2m = np.zeros((Cin0, L2), np.float32)
    b2v = np.zeros((1, L2), np.float32)
    for j in range(W2p):
        w2m[:, j * C2:(j + 1) * C2] = W2n[:, :, 2 * j] * inv2[None, :]                  # even width 2j
        w2m[:, (W2p + j) * C2:(W2p + j + 1) * C2] = W2n[:, :, 2 * j + 1] * inv2[None, :]  # odd width 2j+1
        b2v[0, j * C2:(j + 1) * C2] = bias2
        b2v[0, (W2p + j) * C2:(W2p + j + 1) * C2] = bias2

    # conv1: ConvTranspose2d(16->Cout,(1,K),s2) + BatchNorm2d(Cout) (eval).
    # Output width w_out = 2*w_in + kw; only w_out < 2*W1p survive the final pool.
    inv1 = np.asarray(params['g1']) / np.sqrt(np.asarray(params['v1']) + eps)
    bias1 = (np.asarray(params['b1']) - np.asarray(params['m1'])) * inv1 + np.asarray(params['be1'])
    W1n = np.asarray(params['W1'])[:, :, 0, :]                       # (C2, Cout, K)
    w1m = np.zeros((Kc, Lout), np.float32)
    b1v = np.zeros((1, Lout), np.float32)
    for w_in in range(W2p):
        for kw in range(K):
            w_out = 2 * w_in + kw
            if w_out >= 2 * W1p:
                continue                                             # dead width column
            q, parity = divmod(w_out, 2)
            col0 = parity * Wpad + q * Cout
            w1m[w_in * C2:(w_in + 1) * C2, col0:col0 + Cout] += W1n[:, :, kw] * inv1[None, :]
    for q in range(W1p):
        b1v[0, q * Cout:(q + 1) * Cout] = bias1
        b1v[0, Wpad + q * Cout:Wpad + (q + 1) * Cout] = bias1

    # ---------- input layout: x.view(-1,32,H,1) NCHW -> rows (n*H+h), cols ci ----------
    # TODO(synk): for very large N, fold this transpose / the output transpose into
    # BlockSpecs (emit (N,H,W1p*Cout) directly) instead of separate XLA ops.
    TM = min(tm, _round_up(M, 8))
    Mpad = _round_up(M, TM)
    x2d = jnp.transpose(x.reshape(N, Cin0, H), (0, 2, 1)).reshape(M, Cin0)
    if Mpad > M:
        x2d = jnp.pad(x2d, ((0, Mpad - M), (0, 0)))
    x2d = x2d.astype(jnp.bfloat16)

    w2m_d = jnp.asarray(w2m, jnp.bfloat16)
    w1m_d = jnp.asarray(w1m, jnp.bfloat16)
    b2v_d = jnp.asarray(b2v, jnp.float32)
    b1v_d = jnp.asarray(b1v, jnp.float32)

    def kernel(x_ref, w2_ref, b2_ref, w1_ref, b1_ref, o_ref):
        # ConvT(32->16,(1,K),s2) + BN folded into weights -> one matmul; ReLU.
        pre2 = jnp.dot(x_ref[...], w2_ref[...], preferred_element_type=jnp.float32)
        y2 = jnp.maximum(pre2 + b2_ref[...], 0.0)                    # (TM, L2)
        # MaxPool2d((1,2),2) over width == max of the [even|odd] halves.
        pooled = jnp.maximum(y2[:, :Kc], y2[:, Kc:])                 # (TM, Kc)
        # ConvT(16->Cout,(1,K),s2) + BN folded -> single deep matmul; ReLU.
        pre1 = jnp.dot(pooled.astype(jnp.bfloat16), w1_ref[...],
                       preferred_element_type=jnp.float32)           # (TM, 2*Wpad)
        y1 = jnp.maximum(pre1 + b1_ref[...], 0.0)
        # Final MaxPool over width: one aligned max, one full-width store.
        o_ref[...] = jnp.maximum(y1[:, :Wpad], y1[:, Wpad:])

    out2d = pl.pallas_call(
        kernel,
        out_shape=jax.ShapeDtypeStruct((Mpad, Wpad), jnp.float32),
        grid=(Mpad // TM,),
        in_specs=[
            pl.BlockSpec((TM, Cin0), lambda i: (i, 0)),
            pl.BlockSpec((Cin0, L2), lambda i: (0, 0)),
            pl.BlockSpec((1, L2), lambda i: (0, 0)),
            pl.BlockSpec((Kc, Lout), lambda i: (0, 0)),
            pl.BlockSpec((1, Lout), lambda i: (0, 0)),
        ],
        out_specs=pl.BlockSpec((TM, Wpad), lambda i: (i, 0)),
        compiler_params=pltpu.CompilerParams(dimension_semantics=("parallel",)),
    )(x2d, w2m_d, b2v_d, w1m_d, b1v_d)

    # rows (n*H+h), lanes (w*Cout+co) -> NCHW (N, Cout, H, W1p)
    out2d = out2d[:M, :W1p * Cout]
    return jnp.transpose(out2d.reshape(N, H, W1p, Cout), (0, 3, 1, 2))


# ---------------- pure-numpy reference of the exact PyTorch forward ----------------
def ref_forward(x, p, taskname):
    cfg = var_size[taskname]
    Cin0, C2, Cout, K = 32, 16, cfg['in_size'], cfg['ker_size']
    H = cfg['fc_size'] // 32
    N = x.shape[0]
    x = x.reshape(N, Cin0, H, 1).astype(np.float64)
    eps = 1e-5

    def conv_t(inp, W, b):
        n, ci, h, w = inp.shape
        _, co, kh, kw = W.shape
        ho, wo = (h - 1) * 2 + kh, (w - 1) * 2 + kw
        out = np.zeros((n, co, ho, wo), np.float64) + b.reshape(1, co, 1, 1)
        for ih in range(h):
            for iw in range(w):
                for a in range(kh):
                    for bk in range(kw):
                        out[:, :, ih * 2 + a, iw * 2 + bk] += np.einsum(
                            'ni,io->no', inp[:, :, ih, iw], W[:, :, a, bk])
        return out

    def bn(t, g, bta, m, v):
        return (t - m[None, :, None, None]) / np.sqrt(v[None, :, None, None] + eps) \
            * g[None, :, None, None] + bta[None, :, None, None]

    def pool(t):
        n, c, h, w = t.shape
        ho, wo = (h - 1) // 2 + 1, (w - 2) // 2 + 1
        out = np.zeros((n, c, ho, wo), np.float64)
        for oh in range(ho):
            for ow in range(wo):
                out[:, :, oh, ow] = np.maximum(t[:, :, oh * 2, ow * 2],
                                               t[:, :, oh * 2, ow * 2 + 1])
        return out

    h1 = pool(np.maximum(bn(conv_t(x, p['W2'].astype(np.float64), p['b2'].astype(np.float64)),
                            p['g2'], p['be2'], p['m2'], p['v2']), 0.0))
    h2 = pool(np.maximum(bn(conv_t(h1, p['W1'].astype(np.float64), p['b1'].astype(np.float64)),
                            p['g1'], p['be1'], p['m1'], p['v1']), 0.0))
    return h2.astype(np.float32)


if __name__ == "__main__":
    # dsads: odd conv widths -> exercises dead-column elimination;
    # uschad: even conv widths -> no dead columns.
    expected_shapes = {'dsads': (2, 45, 25, 7), 'uschad': (2, 6, 116, 5)}
    for taskname in ('dsads', 'uschad'):
        N = 2
        key = jax.random.PRNGKey(0)
        kp, kx = jax.random.split(key)
        params = init_params(taskname, kp)
        x = jax.random.normal(kx, (N, var_size[taskname]['fc_size']), jnp.float32)

        out = act_network_decoder_forward(x, params, taskname)
        out = jax.block_until_ready(out)

        ref = ref_forward(np.asarray(x), {k: np.asarray(v) for k, v in params.items()}, taskname)
        assert out.shape == ref.shape == expected_shapes[taskname], (out.shape, ref.shape)
        # Tolerance reflects bf16 MXU operands (per v6e/v7x guidance); accumulation
        # and all elementwise math remain f32.
        np.testing.assert_allclose(np.asarray(out), ref, rtol=2e-2, atol=2e-2)
    print("KERNEL_OK")
</pallas_src>

<mosaic_0001>
module attributes {stable_mosaic.version = 11 : i64} {
  func.func @kernel(%arg0: i32, %arg1: memref<56x32xbf16, #tpu.memory_space<vmem>>, %arg2: memref<32x128xbf16, #tpu.memory_space<vmem>>, %arg3: memref<1x128xf32, #tpu.memory_space<vmem>>, %arg4: memref<64x768xbf16, #tpu.memory_space<vmem>>, %arg5: memref<1x768xf32, #tpu.memory_space<vmem>>, %arg6: memref<56x384xf32, #tpu.memory_space<vmem>>) attributes {dimension_semantics = [#tpu.dimension_semantics<parallel>], iteration_bounds = array<i64: 1>, scalar_prefetch = 0 : i64, scratch_operands = 0 : i64, tpu.core_type = #tpu.core_type<tc>, window_params = [{transform_indices = @transform_0, window_bounds = array<i64: 56, 32>}, {pipeline_mode = #tpu.pipeline_mode<synchronous>, transform_indices = @transform_1, window_bounds = array<i64: 32, 128>}, {pipeline_mode = #tpu.pipeline_mode<synchronous>, transform_indices = @transform_2, window_bounds = array<i64: 1, 128>}, {pipeline_mode = #tpu.pipeline_mode<synchronous>, transform_indices = @transform_3, window_bounds = array<i64: 64, 768>}, {pipeline_mode = #tpu.pipeline_mode<synchronous>, transform_indices = @transform_4, window_bounds = array<i64: 1, 768>}, {transform_indices = @transform_5, window_bounds = array<i64: 56, 384>}]} {
    %c0 = arith.constant 0 : index
    %c0_0 = arith.constant 0 : index
    %0 = vector.load %arg1[%c0, %c0_0] : memref<56x32xbf16, #tpu.memory_space<vmem>>, vector<56x32xbf16>
    %c0_1 = arith.constant 0 : index
    %c0_2 = arith.constant 0 : index
    %1 = vector.load %arg2[%c0_1, %c0_2] : memref<32x128xbf16, #tpu.memory_space<vmem>>, vector<32x128xbf16>
    %cst = arith.constant dense<0.000000e+00> : vector<56x128xf32>
    %2 = tpu.matmul %0, %1, %cst {dimension_numbers = #tpu.dot_dimension_numbers<[1], [0], [0], [1], [0, 0, 1, 1], [], []>} : vector<56x32xbf16>, vector<32x128xbf16>, vector<56x128xf32> -> vector<56x128xf32>
    %c0_3 = arith.constant 0 : index
    %c0_4 = arith.constant 0 : index
    %3 = vector.load %arg3[%c0_3, %c0_4] : memref<1x128xf32, #tpu.memory_space<vmem>>, vector<1x128xf32>
    %4 = vector.broadcast %3 : vector<1x128xf32> to vector<56x128xf32>
    %5 = arith.addf %2, %4 : vector<56x128xf32>
    %cst_5 = arith.constant 0.000000e+00 : f32
    %6 = vector.broadcast %cst_5 : f32 to vector<56x128xf32>
    %7 = arith.maximumf %5, %6 : vector<56x128xf32>
    %8 = vector.extract_strided_slice %7 {offsets = [0, 0], sizes = [56, 64], strides = [1, 1]} : vector<56x128xf32> to vector<56x64xf32>
    %9 = vector.extract_strided_slice %7 {offsets = [0, 64], sizes = [56, 64], strides = [1, 1]} : vector<56x128xf32> to vector<56x64xf32>
    %10 = arith.maximumf %8, %9 : vector<56x64xf32>
    %11 = arith.truncf %10 : vector<56x64xf32> to vector<56x64xbf16>
    %c0_6 = arith.constant 0 : index
    %c0_7 = arith.constant 0 : index
    %12 = vector.load %arg4[%c0_6, %c0_7] : memref<64x768xbf16, #tpu.memory_space<vmem>>, vector<64x768xbf16>
    %cst_8 = arith.constant dense<0.000000e+00> : vector<56x768xf32>
    %13 = tpu.matmul %11, %12, %cst_8 {dimension_numbers = #tpu.dot_dimension_numbers<[1], [0], [0], [1], [0, 0, 1, 1], [], []>} : vector<56x64xbf16>, vector<64x768xbf16>, vector<56x768xf32> -> vector<56x768xf32>
    %c0_9 = arith.constant 0 : index
    %c0_10 = arith.constant 0 : index
    %14 = vector.load %arg5[%c0_9, %c0_10] : memref<1x768xf32, #tpu.memory_space<vmem>>, vector<1x768xf32>
    %15 = vector.broadcast %14 : vector<1x768xf32> to vector<56x768xf32>
    %16 = arith.addf %13, %15 : vector<56x768xf32>
    %cst_11 = arith.constant 0.000000e+00 : f32
    %17 = vector.broadcast %cst_11 : f32 to vector<56x768xf32>
    %18 = arith.maximumf %16, %17 : vector<56x768xf32>
    %19 = vector.extract_strided_slice %18 {offsets = [0, 0], sizes = [56, 384], strides = [1, 1]} : vector<56x768xf32> to vector<56x384xf32>
    %20 = vector.extract_strided_slice %18 {offsets = [0, 384], sizes = [56, 384], strides = [1, 1]} : vector<56x768xf32> to vector<56x384xf32>
    %21 = arith.maximumf %19, %20 : vector<56x384xf32>
    %c0_12 = arith.constant 0 : index
    %c0_13 = arith.constant 0 : index
    %22 = vector.load %arg6[%c0_12, %c0_13] : memref<56x384xf32, #tpu.memory_space<vmem>>, vector<56x384xf32>
    tpu.vector_store %arg6[%c0_12, %c0_13], %21 {strides = array<i32>} : memref<56x384xf32, #tpu.memory_space<vmem>>, vector<56x384xf32>,
    return
  }
  func.func @transform_0(%arg0: i32) -> (i32, i32) {
    %c0_i32 = arith.constant 0 : i32
    %c0_i32_0 = arith.constant 0 : i32
    return %arg0, %c0_i32 : i32, i32
  }
  func.func @transform_1(%arg0: i32) -> (i32, i32) {
    %c0_i32 = arith.constant 0 : i32
    %c0_i32_0 = arith.constant 0 : i32
    %c0_i32_1 = arith.constant 0 : i32
    return %c0_i32, %c0_i32_0 : i32, i32
  }
  func.func @transform_2(%arg0: i32) -> (i32, i32) {
    %c0_i32 = arith.constant 0 : i32
    %c0_i32_0 = arith.constant 0 : i32
    %c0_i32_1 = arith.constant 0 : i32
    return %c0_i32, %c0_i32_0 : i32, i32
  }
  func.func @transform_3(%arg0: i32) -> (i32, i32) {
    %c0_i32 = arith.constant 0 : i32
    %c0_i32_0 = arith.constant 0 : i32
    %c0_i32_1 = arith.constant 0 : i32
    return %c0_i32, %c0_i32_0 : i32, i32
  }
  func.func @transform_4(%arg0: i32) -> (i32, i32) {
    %c0_i32 = arith.constant 0 : i32
    %c0_i32_0 = arith.constant 0 : i32
    %c0_i32_1 = arith.constant 0 : i32
    return %c0_i32, %c0_i32_0 : i32, i32
  }
  func.func @transform_5(%arg0: i32) -> (i32, i32) {
    %c0_i32 = arith.constant 0 : i32
    %c0_i32_0 = arith.constant 0 : i32
    return %arg0, %c0_i32 : i32, i32
  }
}

</mosaic_0001>

<llo_original>
// kernel: tpu_custom_call.1
$region0: #{tpu_custom_call.1}
  #allocation0 [shape = 'u32[]', space=smem, size = 0x4, offset = 0x4, fixed_abs, tag = 'smem constant byte address 0x4 - core index']
  #allocation1 [shape = 'u32[144,128]{1,0:T(1,128)}', space=vmem, size = 0x12000, scoped, tag = 'internal scratch']
  %s0 = inlined_call_operand.vmem [shape: bf16[56,32], index: 0, kind: input, shape index: {}]
  %s1 = inlined_call_operand.vmem [shape: bf16[32,128], index: 1, kind: input, shape index: {}]
  %s2 = inlined_call_operand.vmem [shape: f32[1,128], index: 2, kind: input, shape index: {}]
  %s3 = inlined_call_operand.hbm [shape: bf16[64,768], index: 3, kind: input, shape index: {}]
  %s4 = inlined_call_operand.vmem [shape: f32[1,768], index: 4, kind: input, shape index: {}]
  %s5 = inlined_call_operand.hbm [shape: f32[56,384], index: 5, kind: output, shape index: {}]
  %s6 = sld [smem:[#allocation0]]
  $region34: #{tpu_custom_call.1} parent=0
    _
  %s8 = ssub.s32 1, %s6
  %s9 = scalar_select 0, %s8, %s6
  $region1: #{tpu_custom_call.1} parent=0
    #allocation2 [shape = 'u8[98304]{0}', space=vmem, size = 0x18000, scoped, tag = 'input window, operand 3, single buffered']
    #allocation3 [shape = 's32[1]{0}', space=sflag, size = 0x4, scoped, tag = 'scoped memory for tpu_custom_call.1']
    #allocation4 [shape = 's32[1]{0}', space=sflag, size = 0x4, scoped, tag = 'scoped memory for tpu_custom_call.1']
    #allocation5 [shape = 'u8[86016]{0}', space=vmem, size = 0x15000, scoped, tag = 'output window, operand 0, single buffered']
    %10 = vsyncpa [#allocation3], 0
    %11 = vsyncpa [#allocation4], 0
    // Predicated region
    $region2: #{tpu_custom_call.1} parent=1 // pred_check
      _
    $region3: #{tpu_custom_call.1} parent=1 // pred_check_branch
      %13 = sbr.rel (0) target = $region5
    $region4: #{tpu_custom_call.1} parent=1 // pred_region
      _
    $region5: #{tpu_custom_call.1} parent=1 // pred_fallthru
      _
    // Predicated region
    $region6: #{tpu_custom_call.1} parent=1 // pred_check
      _
    $region7: #{tpu_custom_call.1} parent=1 // pred_check_branch
      %15 = sbr.rel (0) target = $region9
    $region8: #{tpu_custom_call.1} parent=1 // pred_region
      _
    $region9: #{tpu_custom_call.1} parent=1 // pred_fallthru
      _
    // Predicated region
    $region10: #{tpu_custom_call.1} parent=1 // pred_check
      _
    $region11: #{tpu_custom_call.1} parent=1 // pred_check_branch
      %17 = sbr.rel (0) target = $region13
    $region12: #{tpu_custom_call.1} parent=1 // pred_region
      _
    $region13: #{tpu_custom_call.1} parent=1 // pred_fallthru
      _
    // Predicated region
    $region14: #{tpu_custom_call.1} parent=1 // pred_check
      _
    $region15: #{tpu_custom_call.1} parent=1 // pred_check_branch
      %19 = sbr.rel (0) target = $region17
    $region16: #{tpu_custom_call.1} parent=1 // pred_region
      %s21 = ssub.s32 3072, 3072
      %22 = vsyncadd [#allocation3], %s21
      %s23 = sshll.u32 [#allocation2], 4
      %s24 = int_to_ptr.vmem [resolvable:$true] %s23
      %29 = dma.hbm_to_vmem [thread:$0]  %s3, 3072, %s24, [#allocation3], 384, 384, 24
    $region17: #{tpu_custom_call.1} parent=1 // pred_fallthru
      _
    // Predicated region
    $region18: #{tpu_custom_call.1} parent=1 // pred_check
      _
    $region19: #{tpu_custom_call.1} parent=1 // pred_check_branch
      %31 = sbr.rel (0) target = $region21
    $region20: #{tpu_custom_call.1} parent=1 // pred_region
      _
    $region21: #{tpu_custom_call.1} parent=1 // pred_fallthru
      _
    // Predicated region
    $region22: #{tpu_custom_call.1} parent=1 // pred_check
      _
    $region23: #{tpu_custom_call.1} parent=1 // pred_check_branch
      %33 = sbr.rel (0) target = $region25
    $region24: #{tpu_custom_call.1} parent=1 // pred_region
      %34 = dma.done [#allocation3], 3072
    $region25: #{tpu_custom_call.1} parent=1 // pred_fallthru
      _
    %v36 = vld [vmem:[%s0] sm:$0xf]
    %v37 = vld [vmem:[%s0 + $0x4] sm:$0xf]
    %v38 = vld [vmem:[%s0 + $0x8] sm:$0xf]
    %v39 = vld [vmem:[%s0 + $0xc] sm:$0xf]
    %v40 = vld [vmem:[%s0 + $0x10] sm:$0xf]
    %v41 = vld [vmem:[%s0 + $0x14] sm:$0xf]
    %v42 = vld [vmem:[%s0 + $0x18] sm:$0xf]
    %v43 = vld [vmem:[%s1] sm:$0xf]
    %v44 = vld [vmem:[%s1 + $0x4] sm:$0xf]
    %v45 = vld [vmem:[%s1 + $0x8] sm:$0xf]
    %v46 = vld [vmem:[%s1 + $0xc] sm:$0xf]
    %v47 = vld [vmem:[%s2] sm:$0x1]
    %v49 = vlaneseq
    %v50 = vshrl.u32 %v49, 7
    %v51 = vsub.s32 0, %v50
    %v52 = vrot.slane %v47, %v51
    %v61 = vunpack.c.l.b16 %v36
    %v62 = vunpack.c.l.b16 %v37
    %v63 = vunpack.c.l.b16 %v38
    %v64 = vunpack.c.l.b16 %v39
    %v65 = vunpack.c.l.b16 %v40
    %v66 = vunpack.c.l.b16 %v41
    %v67 = vunpack.c.l.b16 %v42
    %v68 = vpack.c.b16 %v62, %v61
    %v69 = vpack.c.b16 %v64, %v63
    %v70 = vpack.c.b16 %v66, %v65
    %v71 = vpack.c.b16 %v67, %v67
    %v76 = vunpack.c.l.b16 %v43
    %v77 = vunpack.c.l.b16 %v44
    %v78 = vunpack.c.l.b16 %v45
    %v79 = vunpack.c.l.b16 %v46
    %v80 = vpack.c.b16 %v77, %v76
    %v81 = vpack.c.b16 %v79, %v78
    %vm84 = vcmask 261120
    %v86 = vsel %vm84, %v68, 0
    %v89 = vsel %vm84, %v69, 0
    %v92 = vsel %vm84, %v70, 0
    %v95 = vsel %vm84, %v71, 0
    %97 = vmatprep.subr.bf16.mxu0 0
    %98 = vmatpush1.bf16.msra.mxu0 %v80
    %99 = vmatprep.subr.bf16.mxu0 0
    %100 = vmatpush1.bf16.msra.mxu0 %v81
    %101 = vmatprep.subr.bf16.mxu0 0
    %102 = vmatpush1.bf16.msra.mxu0 0
    %103 = vmatprep.subr.bf16.mxu0 0
    %104 = vmatpush1.bf16.msra.mxu0 0
    %105 = vmatprep.subr.bf16.mxu0 0
    %106 = vmatpush1.bf16.msra.mxu0 0
    %107 = vmatprep.subr.bf16.mxu0 0
    %108 = vmatpush1.bf16.msra.mxu0 0
    %109 = vmatprep.subr.bf16.mxu0 0
    %110 = vmatpush1.bf16.msra.mxu0 0
    %111 = vmatprep.subr.bf16.mxu0 0
    %112 = vmatpush1.bf16.msra.mxu0 0
    %113 = vmatprep.subr.bf16.mxu0 0
    %114 = vmatpush1.bf16.msra.mxu0 0
    %115 = vmatprep.subr.bf16.mxu0 0
    %116 = vmatpush1.bf16.msra.mxu0 0
    %117 = vmatprep.subr.bf16.mxu0 0
    %118 = vmatpush1.bf16.msra.mxu0 0
    %119 = vmatprep.subr.bf16.mxu0 0
    %120 = vmatpush1.bf16.msra.mxu0 0
    %121 = vmatprep.subr.bf16.mxu0 0
    %122 = vmatpush1.bf16.msra.mxu0 0
    %123 = vmatprep.subr.bf16.mxu0 0
    %124 = vmatpush1.bf16.msra.mxu0 0
    %125 = vmatprep.subr.bf16.mxu0 0
    %126 = vmatpush1.bf16.msra.mxu0 0
    %127 = vmatprep.subr.bf16.mxu0 0
    %128 = vmatpush1.bf16.msra.mxu0 0
    %129 = vmatprep.mubr.bf16.mxu0 0
    %130 = vmatmul.mubr.bf16.gmra.mrb[0].mxu0 %v86
    %v131 = vpop.f32.mrb[0].mxu0
    %v132 = vadd.f32 %v52, %v131
    %v133 = vpop.f32.mrb[0].mxu0
    %v134 = vpop.f32.mrb[0].mxu0
    %v135 = vadd.f32 %v52, %v134
    %v136 = vpop.f32.mrb[0].mxu0
    %137 = vmatprep.mubr.bf16.mxu0 0
    %138 = vmatmul.mubr.bf16.gmra.mrb[0].mxu0 %v89
    %v139 = vpop.f32.mrb[0].mxu0
    %v140 = vadd.f32 %v52, %v139
    %v141 = vpop.f32.mrb[0].mxu0
    %v142 = vpop.f32.mrb[0].mxu0
    %v143 = vadd.f32 %v52, %v142
    %v144 = vpop.f32.mrb[0].mxu0
    %145 = vmatprep.mubr.bf16.mxu0 0
    %146 = vmatmul.mubr.bf16.gmra.mrb[0].mxu0 %v92
    %v147 = vpop.f32.mrb[0].mxu0
    %v148 = vadd.f32 %v52, %v147
    %v149 = vpop.f32.mrb[0].mxu0
    %v150 = vpop.f32.mrb[0].mxu0
    %v151 = vadd.f32 %v52, %v150
    %v152 = vpop.f32.mrb[0].mxu0
    %153 = vmatprep.mubr.bf16.mxu0 0
    %154 = vmatmul.mubr.bf16.gmra.mrb[0].mxu0 %v95
    %v155 = vpop.f32.mrb[0].mxu0
    %v156 = vadd.f32 %v52, %v155
    %v157 = vpop.f32.mrb[0].mxu0
    %v158 = vpop.f32.mrb[0].mxu0
    %v159 = vpop.f32.mrb[0].mxu0
    %160 = vdwg.mxu0
    %v161 = vmax.f32 %v132, 0.0
    %v162 = vmax.f32 %v135, 0.0
    %v163 = vmax.f32 %v140, 0.0
    %v164 = vmax.f32 %v143, 0.0
    %v165 = vmax.f32 %v148, 0.0
    %v166 = vmax.f32 %v151, 0.0
    %v167 = vmax.f32 %v156, 0.0
    %175 = vrot.lane.b32.xlu0 %v161, 64
    %v176 = vpop.permute.xlu0 %175
    %177 = vrot.lane.b32.xlu0 %v162, 64
    %v178 = vpop.permute.xlu0 %177
    %179 = vrot.lane.b32.xlu0 %v163, 64
    %v180 = vpop.permute.xlu0 %179
    %181 = vrot.lane.b32.xlu0 %v164, 64
    %v182 = vpop.permute.xlu0 %181
    %183 = vrot.lane.b32.xlu0 %v165, 64
    %v184 = vpop.permute.xlu0 %183
    %185 = vrot.lane.b32.xlu0 %v166, 64
    %v186 = vpop.permute.xlu0 %185
    %187 = vrot.lane.b32.xlu0 %v167, 64
    %v188 = vpop.permute.xlu0 %187
    %v196 = vmax.f32 %v161, %v176
    %v197 = vmax.f32 %v162, %v178
    %v198 = vmax.f32 %v163, %v180
    %v199 = vmax.f32 %v164, %v182
    %v200 = vmax.f32 %v165, %v184
    %v201 = vmax.f32 %v166, %v186
    %v202 = vmax.f32 %v167, %v188
    %v203 = vpack.c.bf16 %v197, %v196
    %v204 = vpack.c.bf16 %v199, %v198
    %v205 = vpack.c.bf16 %v201, %v200
    %v206 = vpack.c.bf16 %v202, %v202
    %v207 = vld [vmem:[#allocation2] sm:$0xff]
    %v208 = vld [vmem:[#allocation2 + $0x8] sm:$0xff]
    %v209 = vld [vmem:[#allocation2 + $0x10] sm:$0xff]
    %v210 = vld [vmem:[#allocation2 + $0x18] sm:$0xff]
    %v211 = vld [vmem:[#allocation2 + $0x20] sm:$0xff]
    %v212 = vld [vmem:[#allocation2 + $0x28] sm:$0xff]
    %v213 = vld [vmem:[#allocation2 + $0x30] sm:$0xff]
    %v214 = vld [vmem:[#allocation2 + $0x38] sm:$0xff]
    %v215 = vld [vmem:[#allocation2 + $0x40] sm:$0xff]
    %v216 = vld [vmem:[#allocation2 + $0x48] sm:$0xff]
    %v217 = vld [vmem:[#allocation2 + $0x50] sm:$0xff]
    %v218 = vld [vmem:[#allocation2 + $0x58] sm:$0xff]
    %v219 = vld [vmem:[#allocation2 + $0x60] sm:$0xff]
    %v220 = vld [vmem:[#allocation2 + $0x68] sm:$0xff]
    %v221 = vld [vmem:[#allocation2 + $0x70] sm:$0xff]
    %v222 = vld [vmem:[#allocation2 + $0x78] sm:$0xff]
    %v223 = vld [vmem:[#allocation2 + $0x80] sm:$0xff]
    %v224 = vld [vmem:[#allocation2 + $0x88] sm:$0xff]
    %v225 = vld [vmem:[#allocation2 + $0x90] sm:$0xff]
    %v226 = vld [vmem:[#allocation2 + $0x98] sm:$0xff]
    %v227 = vld [vmem:[#allocation2 + $0xa0] sm:$0xff]
    %v228 = vld [vmem:[#allocation2 + $0xa8] sm:$0xff]
    %v229 = vld [vmem:[#allocation2 + $0xb0] sm:$0xff]
    %v230 = vld [vmem:[#allocation2 + $0xb8] sm:$0xff]
    %v231 = vld [vmem:[%s4] sm:$0x3f]
    %v233 = vlaneseq
    %v234 = vshrl.u32 %v233, 7
    %v235 = vsub.s32 0, %v234
    %v236 = vrot.slane %v231, %v235
    %v237 = vlaneseq
    %v238 = vshrl.u32 %v237, 7
    %v239 = vsub.s32 1, %v238
    %v240 = vrot.slane %v231, %v239
    %v241 = vlaneseq
    %v242 = vshrl.u32 %v241, 7
    %v243 = vsub.s32 2, %v242
    %v244 = vrot.slane %v231, %v243
    %v245 = vlaneseq
    %v246 = vshrl.u32 %v245, 7
    %v247 = vsub.s32 3, %v246
    %v248 = vrot.slane %v231, %v247
    %v249 = vlaneseq
    %v250 = vshrl.u32 %v249, 7
    %v251 = vsub.s32 4, %v250
    %v252 = vrot.slane %v231, %v251
    %v253 = vlaneseq
    %v254 = vshrl.u32 %v253, 7
    %v255 = vsub.s32 5, %v254
    %v256 = vrot.slane %v231, %v255
    %v287 = vunpack.c.l.b16 %v207
    %v288 = vunpack.c.h.b16 %v207
    %v289 = vunpack.c.l.b16 %v208
    %v290 = vunpack.c.h.b16 %v208
    %v291 = vunpack.c.l.b16 %v209
    %v292 = vunpack.c.h.b16 %v209
    %v293 = vunpack.c.l.b16 %v210
    %v294 = vunpack.c.h.b16 %v210
    %v295 = vunpack.c.l.b16 %v211
    %v296 = vunpack.c.h.b16 %v211
    %v297 = vunpack.c.l.b16 %v212
    %v298 = vunpack.c.h.b16 %v212
    %v299 = vunpack.c.l.b16 %v213
    %v300 = vunpack.c.h.b16 %v213
    %v301 = vunpack.c.l.b16 %v214
    %v302 = vunpack.c.h.b16 %v214
    %v303 = vunpack.c.l.b16 %v215
    %v304 = vunpack.c.h.b16 %v215
    %v305 = vunpack.c.l.b16 %v216
    %v306 = vunpack.c.h.b16 %v216
    %v307 = vunpack.c.l.b16 %v217
    %v308 = vunpack.c.h.b16 %v217
    %v309 = vunpack.c.l.b16 %v218
    %v310 = vunpack.c.h.b16 %v218
    %v311 = vunpack.c.l.b16 %v219
    %v312 = vunpack.c.h.b16 %v219
    %v313 = vunpack.c.l.b16 %v220
    %v314 = vunpack.c.h.b16 %v220
    %v315 = vunpack.c.l.b16 %v221
    %v316 = vunpack.c.h.b16 %v221
    %v317 = vunpack.c.l.b16 %v222
    %v318 = vunpack.c.h.b16 %v222
    %v319 = vunpack.c.l.b16 %v223
    %v320 = vunpack.c.h.b16 %v223
    %v321 = vunpack.c.l.b16 %v224
    %v322 = vunpack.c.h.b16 %v224
    %v323 = vunpack.c.l.b16 %v225
    %v324 = vunpack.c.h.b16 %v225
    %v325 = vunpack.c.l.b16 %v226
    %v326 = vunpack.c.h.b16 %v226
    %v327 = vunpack.c.l.b16 %v227
    %v328 = vunpack.c.h.b16 %v227
    %v329 = vunpack.c.l.b16 %v228
    %v330 = vunpack.c.h.b16 %v228
    %v331 = vunpack.c.l.b16 %v229
    %v332 = vunpack.c.h.b16 %v229
    %v333 = vunpack.c.l.b16 %v230
    %v334 = vunpack.c.h.b16 %v230
    %v335 = vpack.c.b16 %v293, %v287
    %v336 = vpack.c.b16 %v294, %v288
    %v337 = vpack.c.b16 %v295, %v289
    %v338 = vpack.c.b16 %v296, %v290
    %v339 = vpack.c.b16 %v297, %v291
    %v340 = vpack.c.b16 %v298, %v292
    %v341 = vpack.c.b16 %v305, %v299
    %v342 = vpack.c.b16 %v306, %v300
    %v343 = vpack.c.b16 %v307, %v301
    %v344 = vpack.c.b16 %v308, %v302
    %v345 = vpack.c.b16 %v309, %v303
    %v346 = vpack.c.b16 %v310, %v304
    %v347 = vpack.c.b16 %v317, %v311
    %v348 = vpack.c.b16 %v318, %v312
    %v349 = vpack.c.b16 %v319, %v313
    %v350 = vpack.c.b16 %v320, %v314
    %v351 = vpack.c.b16 %v321, %v315
    %v352 = vpack.c.b16 %v322, %v316
    %v353 = vpack.c.b16 %v329, %v323
    %v354 = vpack.c.b16 %v330, %v324
    %v355 = vpack.c.b16 %v331, %v325
    %v356 = vpack.c.b16 %v332, %v326
    %v357 = vpack.c.b16 %v333, %v327
    %v358 = vpack.c.b16 %v334, %v328
    %vm383 = vcmask 523264
    %v385 = vsel %vm383, %v203, 0
    %v388 = vsel %vm383, %v204, 0
    %v391 = vsel %vm383, %v205, 0
    %v394 = vsel %vm383, %v206, 0
    %396 = vmatprep.subr.bf16.mxu0 %v336
    %397 = vmatpush1.bf16.msra.mxu0 %v335
    %398 = vmatprep.subr.bf16.mxu0 %v342
    %399 = vmatpush1.bf16.msra.mxu0 %v341
    %400 = vmatprep.subr.bf16.mxu0 %v348
    %401 = vmatpush1.bf16.msra.mxu0 %v347
    %402 = vmatprep.subr.bf16.mxu0 %v354
    %403 = vmatpush1.bf16.msra.mxu0 %v353
    %404 = vmatprep.subr.bf16.mxu0 0
    %405 = vmatpush1.bf16.msra.mxu0 0
    %406 = vmatprep.subr.bf16.mxu0 0
    %407 = vmatpush1.bf16.msra.mxu0 0
    %408 = vmatprep.subr.bf16.mxu0 0
    %409 = vmatpush1.bf16.msra.mxu0 0
    %410 = vmatprep.subr.bf16.mxu0 0
    %411 = vmatpush1.bf16.msra.mxu0 0
    %412 = vmatprep.subr.bf16.mxu0 0
    %413 = vmatpush1.bf16.msra.mxu0 0
    %414 = vmatprep.subr.bf16.mxu0 0
    %415 = vmatpush1.bf16.msra.mxu0 0
    %416 = vmatprep.subr.bf16.mxu0 0
    %417 = vmatpush1.bf16.msra.mxu0 0
    %418 = vmatprep.subr.bf16.mxu0 0
    %419 = vmatpush1.bf16.msra.mxu0 0
    %420 = vmatprep.subr.bf16.mxu0 0
    %421 = vmatpush1.bf16.msra.mxu0 0
    %422 = vmatprep.subr.bf16.mxu0 0
    %423 = vmatpush1.bf16.msra.mxu0 0
    %424 = vmatprep.subr.bf16.mxu0 0
    %425 = vmatpush1.bf16.msra.mxu0 0
    %426 = vmatprep.subr.bf16.mxu0 0
    %427 = vmatpush1.bf16.msra.mxu0 0
    %428 = vmatprep.mubr.bf16.mxu0 0
    %429 = vmatmul.mubr.bf16.gmra.mrb[0].mxu0 %v385
    %v430 = vpop.f32.mrb[0].mxu0
    %v431 = vadd.f32 %v236, %v430
    %v432 = vpop.f32.mrb[0].mxu0
    %v433 = vadd.f32 %v240, %v432
    %v434 = vpop.f32.mrb[0].mxu0
    %v435 = vadd.f32 %v236, %v434
    %v436 = vpop.f32.mrb[0].mxu0
    %v437 = vadd.f32 %v240, %v436
    %438 = vmatprep.mubr.bf16.mxu0 0
    %439 = vmatmul.mubr.bf16.gmra.mrb[0].mxu0 %v388
    %v440 = vpop.f32.mrb[0].mxu0
    %v441 = vadd.f32 %v236, %v440
    %v442 = vpop.f32.mrb[0].mxu0
    %v443 = vadd.f32 %v240, %v442
    %v444 = vpop.f32.mrb[0].mxu0
    %v445 = vadd.f32 %v236, %v444
    %v446 = vpop.f32.mrb[0].mxu0
    %v447 = vadd.f32 %v240, %v446
    %448 = vmatprep.mubr.bf16.mxu0 0
    %449 = vmatmul.mubr.bf16.gmra.mrb[0].mxu0 %v391
    %v450 = vpop.f32.mrb[0].mxu0
    %v451 = vadd.f32 %v236, %v450
    %v452 = vpop.f32.mrb[0].mxu0
    %v453 = vadd.f32 %v240, %v452
    %v454 = vpop.f32.mrb[0].mxu0
    %v455 = vadd.f32 %v236, %v454
    %v456 = vpop.f32.mrb[0].mxu0
    %v457 = vadd.f32 %v240, %v456
    %458 = vmatprep.mubr.bf16.mxu0 0
    %459 = vmatmul.mubr.bf16.gmra.mrb[0].mxu0 %v394
    %v460 = vpop.f32.mrb[0].mxu0
    %v461 = vadd.f32 %v236, %v460
    %v462 = vpop.f32.mrb[0].mxu0
    %v463 = vadd.f32 %v240, %v462
    %v464 = vpop.f32.mrb[0].mxu0
    %v465 = vpop.f32.mrb[0].mxu0
    %466 = vdwg.mxu0
    %467 = vmatprep.subr.bf16.mxu0 %v338
    %468 = vmatpush1.bf16.msra.mxu0 %v337
    %469 = vmatprep.subr.bf16.mxu0 %v344
    %470 = vmatpush1.bf16.msra.mxu0 %v343
    %471 = vmatprep.subr.bf16.mxu0 %v350
    %472 = vmatpush1.bf16.msra.mxu0 %v349
    %473 = vmatprep.subr.bf16.mxu0 %v356
    %474 = vmatpush1.bf16.msra.mxu0 %v355
    %475 = vmatprep.subr.bf16.mxu0 0
    %476 = vmatpush1.bf16.msra.mxu0 0
    %477 = vmatprep.subr.bf16.mxu0 0
    %478 = vmatpush1.bf16.msra.mxu0 0
    %479 = vmatprep.subr.bf16.mxu0 0
    %480 = vmatpush1.bf16.msra.mxu0 0
    %481 = vmatprep.subr.bf16.mxu0 0
    %482 = vmatpush1.bf16.msra.mxu0 0
    %483 = vmatprep.subr.bf16.mxu0 0
    %484 = vmatpush1.bf16.msra.mxu0 0
    %485 = vmatprep.subr.bf16.mxu0 0
    %486 = vmatpush1.bf16.msra.mxu0 0
    %487 = vmatprep.subr.bf16.mxu0 0
    %488 = vmatpush1.bf16.msra.mxu0 0
    %489 = vmatprep.subr.bf16.mxu0 0
    %490 = vmatpush1.bf16.msra.mxu0 0
    %491 = vmatprep.subr.bf16.mxu0 0
    %492 = vmatpush1.bf16.msra.mxu0 0
    %493 = vmatprep.subr.bf16.mxu0 0
    %494 = vmatpush1.bf16.msra.mxu0 0
    %495 = vmatprep.subr.bf16.mxu0 0
    %496 = vmatpush1.bf16.msra.mxu0 0
    %497 = vmatprep.subr.bf16.mxu0 0
    %498 = vmatpush1.bf16.msra.mxu0 0
    %499 = vmatprep.mubr.bf16.mxu0 0
    %500 = vmatmul.mubr.bf16.gmra.mrb[0].mxu0 %v385
    %v501 = vpop.f32.mrb[0].mxu0
    %v502 = vadd.f32 %v244, %v501
    %v503 = vpop.f32.mrb[0].mxu0
    %v504 = vadd.f32 %v248, %v503
    %v505 = vpop.f32.mrb[0].mxu0
    %v506 = vadd.f32 %v244, %v505
    %v507 = vpop.f32.mrb[0].mxu0
    %v508 = vadd.f32 %v248, %v507
    %509 = vmatprep.mubr.bf16.mxu0 0
    %510 = vmatmul.mubr.bf16.gmra.mrb[0].mxu0 %v388
    %v511 = vpop.f32.mrb[0].mxu0
    %v512 = vadd.f32 %v244, %v511
    %v513 = vpop.f32.mrb[0].mxu0
    %v514 = vadd.f32 %v248, %v513
    %v515 = vpop.f32.mrb[0].mxu0
    %v516 = vadd.f32 %v244, %v515
    %v517 = vpop.f32.mrb[0].mxu0
    %v518 = vadd.f32 %v248, %v517
    %519 = vmatprep.mubr.bf16.mxu0 0
    %520 = vmatmul.mubr.bf16.gmra.mrb[0].mxu0 %v391
    %v521 = vpop.f32.mrb[0].mxu0
    %v522 = vadd.f32 %v244, %v521
    %v523 = vpop.f32.mrb[0].mxu0
    %v524 = vadd.f32 %v248, %v523
    %v525 = vpop.f32.mrb[0].mxu0
    %v526 = vadd.f32 %v244, %v525
    %v527 = vpop.f32.mrb[0].mxu0
    %v528 = vadd.f32 %v248, %v527
    %529 = vmatprep.mubr.bf16.mxu0 0
    %530 = vmatmul.mubr.bf16.gmra.mrb[0].mxu0 %v394
    %v531 = vpop.f32.mrb[0].mxu0
    %v532 = vadd.f32 %v244, %v531
    %v533 = vpop.f32.mrb[0].mxu0
    %v534 = vadd.f32 %v248, %v533
    %v535 = vpop.f32.mrb[0].mxu0
    %v536 = vpop.f32.mrb[0].mxu0
    %537 = vdwg.mxu0
    %538 = vmatprep.subr.bf16.mxu0 %v340
    %539 = vmatpush1.bf16.msra.mxu0 %v339
    %540 = vmatprep.subr.bf16.mxu0 %v346
    %541 = vmatpush1.bf16.msra.mxu0 %v345
    %542 = vmatprep.subr.bf16.mxu0 %v352
    %543 = vmatpush1.bf16.msra.mxu0 %v351
    %544 = vmatprep.subr.bf16.mxu0 %v358
    %545 = vmatpush1.bf16.msra.mxu0 %v357
    %546 = vmatprep.subr.bf16.mxu0 0
    %547 = vmatpush1.bf16.msra.mxu0 0
    %548 = vmatprep.subr.bf16.mxu0 0
    %549 = vmatpush1.bf16.msra.mxu0 0
    %550 = vmatprep.subr.bf16.mxu0 0
    %551 = vmatpush1.bf16.msra.mxu0 0
    %552 = vmatprep.subr.bf16.mxu0 0
    %553 = vmatpush1.bf16.msra.mxu0 0
    %554 = vmatprep.subr.bf16.mxu0 0
    %555 = vmatpush1.bf16.msra.mxu0 0
    %556 = vmatprep.subr.bf16.mxu0 0
    %557 = vmatpush1.bf16.msra.mxu0 0
    %558 = vmatprep.subr.bf16.mxu0 0
    %559 = vmatpush1.bf16.msra.mxu0 0
    %560 = vmatprep.subr.bf16.mxu0 0
    %561 = vmatpush1.bf16.msra.mxu0 0
    %562 = vmatprep.subr.bf16.mxu0 0
    %563 = vmatpush1.bf16.msra.mxu0 0
    %564 = vmatprep.subr.bf16.mxu0 0
    %565 = vmatpush1.bf16.msra.mxu0 0
    %566 = vmatprep.subr.bf16.mxu0 0
    %567 = vmatpush1.bf16.msra.mxu0 0
    %568 = vmatprep.subr.bf16.mxu0 0
    %569 = vmatpush1.bf16.msra.mxu0 0
    %570 = vmatprep.mubr.bf16.mxu0 0
    %571 = vmatmul.mubr.bf16.gmra.mrb[0].mxu0 %v385
    %v572 = vpop.f32.mrb[0].mxu0
    %v573 = vadd.f32 %v252, %v572
    %v574 = vpop.f32.mrb[0].mxu0
    %v575 = vadd.f32 %v256, %v574
    %v576 = vpop.f32.mrb[0].mxu0
    %v577 = vadd.f32 %v252, %v576
    %v578 = vpop.f32.mrb[0].mxu0
    %v579 = vadd.f32 %v256, %v578
    %580 = vmatprep.mubr.bf16.mxu0 0
    %581 = vmatmul.mubr.bf16.gmra.mrb[0].mxu0 %v388
    %v582 = vpop.f32.mrb[0].mxu0
    %v583 = vadd.f32 %v252, %v582
    %v584 = vpop.f32.mrb[0].mxu0
    %v585 = vadd.f32 %v256, %v584
    %v586 = vpop.f32.mrb[0].mxu0
    %v587 = vadd.f32 %v252, %v586
    %v588 = vpop.f32.mrb[0].mxu0
    %v589 = vadd.f32 %v256, %v588
    %590 = vmatprep.mubr.bf16.mxu0 0
    %591 = vmatmul.mubr.bf16.gmra.mrb[0].mxu0 %v391
    %v592 = vpop.f32.mrb[0].mxu0
    %v593 = vadd.f32 %v252, %v592
    %v594 = vpop.f32.mrb[0].mxu0
    %v595 = vadd.f32 %v256, %v594
    %v596 = vpop.f32.mrb[0].mxu0
    %v597 = vadd.f32 %v252, %v596
    %v598 = vpop.f32.mrb[0].mxu0
    %v599 = vadd.f32 %v256, %v598
    %600 = vmatprep.mubr.bf16.mxu0 0
    %601 = vmatmul.mubr.bf16.gmra.mrb[0].mxu0 %v394
    %v602 = vpop.f32.mrb[0].mxu0
    %v603 = vadd.f32 %v252, %v602
    %v604 = vpop.f32.mrb[0].mxu0
    %v605 = vadd.f32 %v256, %v604
    %v606 = vpop.f32.mrb[0].mxu0
    %v607 = vpop.f32.mrb[0].mxu0
    %608 = vdwg.mxu0
    %v609 = vmax.f32 %v431, 0.0
    %v610 = vmax.f32 %v433, 0.0
    %v611 = vmax.f32 %v502, 0.0
    %v612 = vmax.f32 %v504, 0.0
    %v613 = vmax.f32 %v573, 0.0
    %v614 = vmax.f32 %v575, 0.0
    %v615 = vmax.f32 %v435, 0.0
    %v616 = vmax.f32 %v437, 0.0
    %v617 = vmax.f32 %v506, 0.0
    %v618 = vmax.f32 %v508, 0.0
    %v619 = vmax.f32 %v577, 0.0
    %v620 = vmax.f32 %v579, 0.0
    %v621 = vmax.f32 %v441, 0.0
    %v622 = vmax.f32 %v443, 0.0
    %v623 = vmax.f32 %v512, 0.0
    %v624 = vmax.f32 %v514, 0.0
    %v625 = vmax.f32 %v583, 0.0
    %v626 = vmax.f32 %v585, 0.0
    %v627 = vmax.f32 %v445, 0.0
    %v628 = vmax.f32 %v447, 0.0
    %v629 = vmax.f32 %v516, 0.0
    %v630 = vmax.f32 %v518, 0.0
    %v631 = vmax.f32 %v587, 0.0
    %v632 = vmax.f32 %v589, 0.0
    %v633 = vmax.f32 %v451, 0.0
    %v634 = vmax.f32 %v453, 0.0
    %v635 = vmax.f32 %v522, 0.0
    %v636 = vmax.f32 %v524, 0.0
    %v637 = vmax.f32 %v593, 0.0
    %v638 = vmax.f32 %v595, 0.0
    %v639 = vmax.f32 %v455, 0.0
    %v640 = vmax.f32 %v457, 0.0
    %v641 = vmax.f32 %v526, 0.0
    %v642 = vmax.f32 %v528, 0.0
    %v643 = vmax.f32 %v597, 0.0
    %v644 = vmax.f32 %v599, 0.0
    %v645 = vmax.f32 %v461, 0.0
    %v646 = vmax.f32 %v463, 0.0
    %v647 = vmax.f32 %v532, 0.0
    %v648 = vmax.f32 %v534, 0.0
    %v649 = vmax.f32 %v603, 0.0
    %v650 = vmax.f32 %v605, 0.0
    %v651 = vmax.f32 %v609, %v612
    %v652 = vmax.f32 %v610, %v613
    %v653 = vmax.f32 %v611, %v614
    %v654 = vmax.f32 %v615, %v618
    %v655 = vmax.f32 %v616, %v619
    %v656 = vmax.f32 %v617, %v620
    %v657 = vmax.f32 %v621, %v624
    %v658 = vmax.f32 %v622, %v625
    %v659 = vmax.f32 %v623, %v626
    %v660 = vmax.f32 %v627, %v630
    %v661 = vmax.f32 %v628, %v631
    %v662 = vmax.f32 %v629, %v632
    %v663 = vmax.f32 %v633, %v636
    %v664 = vmax.f32 %v634, %v637
    %v665 = vmax.f32 %v635, %v638
    %v666 = vmax.f32 %v639, %v642
    %v667 = vmax.f32 %v640, %v643
    %v668 = vmax.f32 %v641, %v644
    %v669 = vmax.f32 %v645, %v648
    %v670 = vmax.f32 %v646, %v649
    %v671 = vmax.f32 %v647, %v650
    %672 = vst [vmem:[#allocation5] sm:$0xff] %v651
    %673 = vst [vmem:[#allocation5 + $0x8] sm:$0xff] %v652
    %674 = vst [vmem:[#allocation5 + $0x10] sm:$0xff] %v653
    %675 = vst [vmem:[#allocation5 + $0x18] sm:$0xff] %v654
    %676 = vst [vmem:[#allocation5 + $0x20] sm:$0xff] %v655
    %677 = vst [vmem:[#allocation5 + $0x28] sm:$0xff] %v656
    %678 = vst [vmem:[#allocation5 + $0x30] sm:$0xff] %v657
    %679 = vst [vmem:[#allocation5 + $0x38] sm:$0xff] %v658
    %680 = vst [vmem:[#allocation5 + $0x40] sm:$0xff] %v659
    %681 = vst [vmem:[#allocation5 + $0x48] sm:$0xff] %v660
    %682 = vst [vmem:[#allocation5 + $0x50] sm:$0xff] %v661
    %683 = vst [vmem:[#allocation5 + $0x58] sm:$0xff] %v662
    %684 = vst [vmem:[#allocation5 + $0x60] sm:$0xff] %v663
    %685 = vst [vmem:[#allocation5 + $0x68] sm:$0xff] %v664
    %686 = vst [vmem:[#allocation5 + $0x70] sm:$0xff] %v665
    %687 = vst [vmem:[#allocation5 + $0x78] sm:$0xff] %v666
    %688 = vst [vmem:[#allocation5 + $0x80] sm:$0xff] %v667
    %689 = vst [vmem:[#allocation5 + $0x88] sm:$0xff] %v668
    %690 = vst [vmem:[#allocation5 + $0x90] sm:$0xff] %v669
    %691 = vst [vmem:[#allocation5 + $0x98] sm:$0xff] %v670
    %692 = vst [vmem:[#allocation5 + $0xa0] sm:$0xff] %v671
    // Predicated region
    $region26: #{tpu_custom_call.1} parent=1 // pred_check
      _
    $region27: #{tpu_custom_call.1} parent=1 // pred_check_branch
      %694 = sbr.rel (0) target = $region29
    $region28: #{tpu_custom_call.1} parent=1 // pred_region
      %s696 = ssub.s32 2688, 2688
      %697 = vsyncadd [#allocation4], %s696
      %s698 = sshll.u32 [#allocation5], 4
      %s699 = int_to_ptr.vmem [resolvable:$true] %s698
      %704 = dma.vmem_to_hbm [thread:$0]  %s699, 2688, %s5, [#allocation4], 384, 384, 24
    $region29: #{tpu_custom_call.1} parent=1 // pred_fallthru
      _
    // Predicated region
    $region30: #{tpu_custom_call.1} parent=1 // pred_check
      _
    $region31: #{tpu_custom_call.1} parent=1 // pred_check_branch
      %706 = sbr.rel (0) target = $region33
    $region32: #{tpu_custom_call.1} parent=1 // pred_region
      %707 = dma.done [#allocation4], 2688
    $region33: #{tpu_custom_call.1} parent=1 // pred_fallthru
      _
    %708 = vsyncpa [#allocation3], 1
    %709 = vsyncpa [#allocation4], 1

</llo_original>
